<compile_context>
chip_gen: v7x
topology: tpu7x:2x2x1
jax: 0.10.0
libtpu: 0.0.40
codegen_flags: <defaults>
</compile_context>

<pallas_src>
import numpy as np
import jax
import jax.numpy as jnp
from jax.experimental import pallas as pl
from jax.experimental.pallas import tpu as pltpu  # noqa: F401  (TPU backend import)

# ---------------- small shapes consistent with the module ----------------
B, T = 2, 8      # batch, sequence length
D    = 32        # embedding_dim
V    = 64        # vocab_size


# ---------------- Pallas kernel ----------------
def mlm_kernel(x_ref, w_ref, b_ref, o_ref):
    # (B*T, D) @ (D, V) + (1, V) -> (B*T, V): one MXU matmul, one VPU bias add.
    o_ref[...] = (
        jnp.dot(x_ref[...], w_ref[...], preferred_element_type=jnp.float32)
        + b_ref[...]
    )


# ---------------- wrapper ----------------
@jax.jit
def bert_mlm_forward(x, w, b2d):
    """x: (B, T, D) f32; w: (D, V) f32 (Linear weight transposed); b2d: (1, V) f32
    -> (B, T, V) f32."""
    Bb, Tt, Dd = x.shape
    Vv = w.shape[1]
    BT = Bb * Tt

    # Contiguous reshape: bitcast only, no data movement / extra launch.
    x2d = x.reshape(BT, Dd)

    out2d = pl.pallas_call(
        mlm_kernel,
        out_shape=jax.ShapeDtypeStruct((BT, Vv), jnp.float32),
        # No grid: one launch, one step, everything resident in VMEM.
        in_specs=[
            pl.BlockSpec((BT, Dd), lambda: (0, 0)),
            pl.BlockSpec((Dd, Vv), lambda: (0, 0)),
            pl.BlockSpec((1, Vv),  lambda: (0, 0)),
        ],
        out_specs=pl.BlockSpec((BT, Vv), lambda: (0, 0)),
    )(x2d, w, b2d)

    # Contiguous reshape back to (B, T, V): bitcast only.
    return out2d.reshape(Bb, Tt, Vv)


# ---------------- main ----------------
if __name__ == "__main__":
    key = jax.random.PRNGKey(0)
    k_x, k_w, k_b = jax.random.split(key, 3)

    # torch.nn.Linear(d, V) holds weight (V, D), bias (V,).  We store the weight
    # transposed as (D, V) once at setup so the kernel computes x @ W + b directly.
    w = 0.02 * jax.random.normal(k_w, (D, V), dtype=jnp.float32)
    b = 0.02 * jax.random.normal(k_b, (V,), dtype=jnp.float32)
    b2d = b.reshape(1, V)

    x = jax.random.normal(k_x, (B, T, D), dtype=jnp.float32)

    y = jax.block_until_ready(bert_mlm_forward(x, w, b2d))

    # pure-JAX reference (same math as torch.nn.Linear forward)
    ref = x @ w + b

    assert y.shape == (B, T, V)
    np.testing.assert_allclose(np.asarray(y), np.asarray(ref), rtol=1e-5, atol=1e-5)
    assert np.all(np.isfinite(np.asarray(y)))

    print("KERNEL_OK")
</pallas_src>

<mosaic_0001>
module attributes {stable_mosaic.version = 11 : i64} {
  func.func @mlm_kernel(%arg0: memref<16x32xf32, #tpu.memory_space<vmem>>, %arg1: memref<32x64xf32, #tpu.memory_space<vmem>>, %arg2: memref<1x64xf32, #tpu.memory_space<vmem>>, %arg3: memref<16x64xf32, #tpu.memory_space<vmem>>) attributes {dimension_semantics = [], scalar_prefetch = 0 : i64, scratch_operands = 0 : i64, tpu.core_type = #tpu.core_type<tc>} {
    %c0 = arith.constant 0 : index
    %c0_0 = arith.constant 0 : index
    %0 = vector.load %arg0[%c0, %c0_0] : memref<16x32xf32, #tpu.memory_space<vmem>>, vector<16x32xf32>
    %c0_1 = arith.constant 0 : index
    %c0_2 = arith.constant 0 : index
    %1 = vector.load %arg1[%c0_1, %c0_2] : memref<32x64xf32, #tpu.memory_space<vmem>>, vector<32x64xf32>
    %cst = arith.constant dense<0.000000e+00> : vector<16x64xf32>
    %2 = tpu.matmul %0, %1, %cst {dimension_numbers = #tpu.dot_dimension_numbers<[1], [0], [0], [1], [0, 0, 1, 1], [], []>} : vector<16x32xf32>, vector<32x64xf32>, vector<16x64xf32> -> vector<16x64xf32>
    %c0_3 = arith.constant 0 : index
    %c0_4 = arith.constant 0 : index
    %3 = vector.load %arg2[%c0_3, %c0_4] : memref<1x64xf32, #tpu.memory_space<vmem>>, vector<1x64xf32>
    %4 = vector.broadcast %3 : vector<1x64xf32> to vector<16x64xf32>
    %5 = arith.addf %2, %4 : vector<16x64xf32>
    %c0_5 = arith.constant 0 : index
    %c0_6 = arith.constant 0 : index
    %6 = vector.load %arg3[%c0_5, %c0_6] : memref<16x64xf32, #tpu.memory_space<vmem>>, vector<16x64xf32>
    tpu.vector_store %arg3[%c0_5, %c0_6], %5 {strides = array<i32>} : memref<16x64xf32, #tpu.memory_space<vmem>>, vector<16x64xf32>,
    return
  }
}

</mosaic_0001>

<llo_original>
// kernel: bert_mlm_forward.1
$region0: #{bert_mlm_forward.1}
  #allocation0 [shape = 'u32[]', space=smem, size = 0x4, offset = 0x4, fixed_abs, tag = 'smem constant byte address 0x4 - core index']
  #allocation1 [shape = 'u32[144,128]{1,0:T(1,128)}', space=vmem, size = 0x12000, scoped, tag = 'internal scratch']
  %s0 = inlined_call_operand.hbm [shape: f32[16,32], index: 0, kind: input, shape index: {}]
  %s1 = inlined_call_operand.hbm [shape: f32[32,64], index: 1, kind: input, shape index: {}]
  %s2 = inlined_call_operand.vmem [shape: f32[1,64], index: 2, kind: input, shape index: {}]
  %s3 = inlined_call_operand.hbm [shape: f32[16,64], index: 3, kind: output, shape index: {}]
  %s4 = sld [smem:[#allocation0]]
  $region30: #{bert_mlm_forward.1} parent=0
    _
  %s6 = ssub.s32 1, %s4
  %s7 = scalar_select 0, %s6, %s4
  $region1: #{bert_mlm_forward.1} parent=0
    #allocation2 [shape = 'u8[8192]{0}', space=vmem, size = 0x2000, scoped, tag = 'input window, operand 0, single buffered']
    #allocation3 [shape = 's32[1]{0}', space=sflag, size = 0x4, scoped, tag = 'scoped memory for bert_mlm_forward.1']
    #allocation4 [shape = 's32[1]{0}', space=sflag, size = 0x4, scoped, tag = 'scoped memory for bert_mlm_forward.1']
    #allocation5 [shape = 'u8[16384]{0}', space=vmem, size = 0x4000, scoped, tag = 'input window, operand 1, single buffered']
    #allocation6 [shape = 's32[1]{0}', space=sflag, size = 0x4, scoped, tag = 'scoped memory for bert_mlm_forward.1']
    #allocation7 [shape = 'u8[8192]{0}', space=vmem, size = 0x2000, scoped, tag = 'output window, operand 0, single buffered']
    %8 = vsyncpa [#allocation3], 0
    %9 = vsyncpa [#allocation6], 0
    %10 = vsyncpa [#allocation4], 0
    // Predicated region
    $region2: #{bert_mlm_forward.1} parent=1 // pred_check
      _
    $region3: #{bert_mlm_forward.1} parent=1 // pred_check_branch
      %12 = sbr.rel (0) target = $region5
    $region4: #{bert_mlm_forward.1} parent=1 // pred_region
      %s14 = ssub.s32 256, 256
      %15 = vsyncadd [#allocation3], %s14
      %s16 = sshll.u32 [#allocation2], 4
      %s17 = int_to_ptr.vmem [resolvable:$true] %s16
      %22 = dma.hbm_to_vmem [thread:$0]  %s0, 256, %s17, [#allocation3], 128, 128, 8
    $region5: #{bert_mlm_forward.1} parent=1 // pred_fallthru
      _
    // Predicated region
    $region6: #{bert_mlm_forward.1} parent=1 // pred_check
      _
    $region7: #{bert_mlm_forward.1} parent=1 // pred_check_branch
      %24 = sbr.rel (0) target = $region9
    $region8: #{bert_mlm_forward.1} parent=1 // pred_region
      %s26 = ssub.s32 512, 512
      %27 = vsyncadd [#allocation6], %s26
      %s28 = sshll.u32 [#allocation5], 4
      %s29 = int_to_ptr.vmem [resolvable:$true] %s28
      %34 = dma.hbm_to_vmem [thread:$0]  %s1, 512, %s29, [#allocation6], 128, 128, 8
    $region9: #{bert_mlm_forward.1} parent=1 // pred_fallthru
      _
    // Predicated region
    $region10: #{bert_mlm_forward.1} parent=1 // pred_check
      _
    $region11: #{bert_mlm_forward.1} parent=1 // pred_check_branch
      %36 = sbr.rel (0) target = $region13
    $region12: #{bert_mlm_forward.1} parent=1 // pred_region
      _
    $region13: #{bert_mlm_forward.1} parent=1 // pred_fallthru
      _
    // Predicated region
    $region14: #{bert_mlm_forward.1} parent=1 // pred_check
      _
    $region15: #{bert_mlm_forward.1} parent=1 // pred_check_branch
      %38 = sbr.rel (0) target = $region17
    $region16: #{bert_mlm_forward.1} parent=1 // pred_region
      %39 = dma.done [#allocation3], 256
    $region17: #{bert_mlm_forward.1} parent=1 // pred_fallthru
      _
    // Predicated region
    $region18: #{bert_mlm_forward.1} parent=1 // pred_check
      _
    $region19: #{bert_mlm_forward.1} parent=1 // pred_check_branch
      %41 = sbr.rel (0) target = $region21
    $region20: #{bert_mlm_forward.1} parent=1 // pred_region
      %42 = dma.done [#allocation6], 512
    $region21: #{bert_mlm_forward.1} parent=1 // pred_fallthru
      _
    %v43 = vld [vmem:[#allocation2] sm:$0xff]
    %v44 = vld [vmem:[#allocation2 + $0x8] sm:$0xff]
    %v45 = vld [vmem:[#allocation5] sm:$0xff]
    %v46 = vld [vmem:[#allocation5 + $0x8] sm:$0xff]
    %v47 = vld [vmem:[#allocation5 + $0x10] sm:$0xff]
    %v48 = vld [vmem:[#allocation5 + $0x18] sm:$0xff]
    %v49 = vld [vmem:[%s2] sm:$0x1]
    %v51 = vlaneseq
    %v52 = vshrl.u32 %v51, 7
    %v53 = vsub.s32 0, %v52
    %v54 = vrot.slane %v49, %v53
    %vm56 = vcmask 261120
    %v58 = vsel %vm56, %v43, 0
    %v61 = vsel %vm56, %v44, 0
    %63 = vmatprep.subr.mxu0 0.0
    %64 = vmatpush1.msra.mxu0 %v45
    %65 = vmatprep.subr.mxu0 0.0
    %66 = vmatpush1.msra.mxu0 %v46
    %67 = vmatprep.subr.mxu0 0.0
    %68 = vmatpush1.msra.mxu0 %v47
    %69 = vmatprep.subr.mxu0 0.0
    %70 = vmatpush1.msra.mxu0 %v48
    %71 = vmatprep.subr.mxu0 0.0
    %72 = vmatpush1.msra.mxu0 0.0
    %73 = vmatprep.subr.mxu0 0.0
    %74 = vmatpush1.msra.mxu0 0.0
    %75 = vmatprep.subr.mxu0 0.0
    %76 = vmatpush1.msra.mxu0 0.0
    %77 = vmatprep.subr.mxu0 0.0
    %78 = vmatpush1.msra.mxu0 0.0
    %79 = vmatprep.subr.mxu0 0.0
    %80 = vmatpush1.msra.mxu0 0.0
    %81 = vmatprep.subr.mxu0 0.0
    %82 = vmatpush1.msra.mxu0 0.0
    %83 = vmatprep.subr.mxu0 0.0
    %84 = vmatpush1.msra.mxu0 0.0
    %85 = vmatprep.subr.mxu0 0.0
    %86 = vmatpush1.msra.mxu0 0.0
    %87 = vmatprep.subr.mxu0 0.0
    %88 = vmatpush1.msra.mxu0 0.0
    %89 = vmatprep.subr.mxu0 0.0
    %90 = vmatpush1.msra.mxu0 0.0
    %91 = vmatprep.subr.mxu0 0.0
    %92 = vmatpush1.msra.mxu0 0.0
    %93 = vmatprep.subr.mxu0 0.0
    %94 = vmatpush1.msra.mxu0 0.0
    %95 = vmatprep.subr.mxu0 0.0
    %96 = vmatpush1.msra.mxu0 0.0
    %97 = vmatprep.subr.mxu0 0.0
    %98 = vmatpush1.msra.mxu0 0.0
    %99 = vmatprep.subr.mxu0 0.0
    %100 = vmatpush1.msra.mxu0 0.0
    %101 = vmatprep.subr.mxu0 0.0
    %102 = vmatpush1.msra.mxu0 0.0
    %103 = vmatprep.subr.mxu0 0.0
    %104 = vmatpush1.msra.mxu0 0.0
    %105 = vmatprep.subr.mxu0 0.0
    %106 = vmatpush1.msra.mxu0 0.0
    %107 = vmatprep.subr.mxu0 0.0
    %108 = vmatpush1.msra.mxu0 0.0
    %109 = vmatprep.subr.mxu0 0.0
    %110 = vmatpush1.msra.mxu0 0.0
    %111 = vmatprep.subr.mxu0 0.0
    %112 = vmatpush1.msra.mxu0 0.0
    %113 = vmatprep.subr.mxu0 0.0
    %114 = vmatpush1.msra.mxu0 0.0
    %115 = vmatprep.subr.mxu0 0.0
    %116 = vmatpush1.msra.mxu0 0.0
    %117 = vmatprep.subr.mxu0 0.0
    %118 = vmatpush1.msra.mxu0 0.0
    %119 = vmatprep.subr.mxu0 0.0
    %120 = vmatpush1.msra.mxu0 0.0
    %121 = vmatprep.subr.mxu0 0.0
    %122 = vmatpush1.msra.mxu0 0.0
    %123 = vmatprep.subr.mxu0 0.0
    %124 = vmatpush1.msra.mxu0 0.0
    %125 = vmatprep.subr.mxu0 0.0
    %126 = vmatpush1.msra.mxu0 0.0
    %127 = vmatprep.mubr.f32.mxu0 0.0
    %128 = vmatmul.mubr.f32.gmra.mrb[0].mxu0 %v58
    %v129 = vpop.f32.mrb[0].mxu0
    %v130 = vadd.f32 %v54, %v129
    %v131 = vpop.f32.mrb[0].mxu0
    %132 = vmatprep.mubr.f32.mxu0 0.0
    %133 = vmatmul.mubr.f32.gmra.mrb[0].mxu0 %v61
    %v134 = vpop.f32.mrb[0].mxu0
    %v135 = vadd.f32 %v54, %v134
    %v136 = vpop.f32.mrb[0].mxu0
    %137 = vdwg.mxu0
    %vm138 = vcmask 523264
    %139 = vst.msk [vmem:[#allocation7] sm:$0xff] %vm138, %v130
    %140 = vst.msk [vmem:[#allocation7 + $0x8] sm:$0xff] %vm138, %v135
    // Predicated region
    $region22: #{bert_mlm_forward.1} parent=1 // pred_check
      _
    $region23: #{bert_mlm_forward.1} parent=1 // pred_check_branch
      %142 = sbr.rel (0) target = $region25
    $region24: #{bert_mlm_forward.1} parent=1 // pred_region
      %s144 = ssub.s32 256, 256
      %145 = vsyncadd [#allocation4], %s144
      %s146 = sshll.u32 [#allocation7], 4
      %s147 = int_to_ptr.vmem [resolvable:$true] %s146
      %152 = dma.vmem_to_hbm [thread:$0]  %s147, 256, %s3, [#allocation4], 128, 128, 8
    $region25: #{bert_mlm_forward.1} parent=1 // pred_fallthru
      _
    // Predicated region
    $region26: #{bert_mlm_forward.1} parent=1 // pred_check
      _
    $region27: #{bert_mlm_forward.1} parent=1 // pred_check_branch
      %154 = sbr.rel (0) target = $region29
    $region28: #{bert_mlm_forward.1} parent=1 // pred_region
      %155 = dma.done [#allocation4], 256
    $region29: #{bert_mlm_forward.1} parent=1 // pred_fallthru
      _
    %156 = vsyncpa [#allocation3], 1
    %157 = vsyncpa [#allocation6], 1
    %158 = vsyncpa [#allocation4], 1

</llo_original>
